<compile_context>
chip_gen: v6e
topology: v6e:2x2x1
jax: 0.10.0
libtpu: 0.0.40
codegen_flags: <defaults>
</compile_context>

<pallas_src>
import functools

import jax
import jax.numpy as jnp
from jax.experimental import pallas as pl
from jax.experimental.pallas import tpu as pltpu

_LANES = 128
_ROW_ALIGN = 16           # bf16 sublane packing: keep row blocks a multiple of 16
_BIAS_ROWS = {"bu": 0, "bgi": 1, "bhn": 2, "bn2": 3, "bn3": 4, "by": 5}
_N_BIAS_ROWS = 8


def _round_up(x, m):
    return (x + m - 1) // m * m


def _make_layout(H, E):
    """Row layout of the packed weight slab: name -> (row_offset, K_rows)."""
    specs = (
        ("wf1", _LANES),   # fused [fc1 | adv-l1(s) | V-l1]; K = full xs tile
        ("wh", H),         # GRU hidden gates [Whr|Whz|Whn]      (K = H)
        ("wi", H),         # GRU input  gates [Wir|Wiz|Win]      (K = H)
        ("w2q", H),        # folded fc2: W2 @ Wn1q               (K = H)
        ("wn2", E),        # adv layer 2                         (K = E)
        ("wn3", E),        # adv layer 3                         (K = E)
        ("wn4", E),        # adv layer 4, cols shifted to [H,H+A)
        ("wv2", E),        # V  layer 2, cols shifted to [H,H+A)
    )
    layout, off = {}, 0
    for name, rows in specs:
        layout[name] = (off, rows)
        off += rows
    return layout, off


def _make_kernel(H, E, layout, compute_dtype):
    f32 = jnp.float32

    def kernel(xs_ref, h0_ref, w_ref, b_ref, out_ref):
        def W(name):
            off, rows = layout[name]
            return w_ref[off:off + rows, :]

        def B(name):
            r = _BIAS_ROWS[name]
            return b_ref[r:r + 1, :]

        def mm(act, name):
            return jnp.dot(act.astype(compute_dtype), W(name),
                           preferred_element_type=f32)

        xs = xs_ref[...]            # (NB, 128) bf16: [x | s | 0]
        h0 = h0_ref[...]            # (NB, H)   f32

        # ---- fused first layer: fc1 + adv-l1(s part) + V-l1 (one matmul) ---
        # lanes [0,H): fc1 pre-activation; [H,H+E): s@Wn1s + bn1 + b2@Wn1q;
        # lanes [H+E,H+2E): s@Wv1 + bv1.  Zero weight rows prevent cross-talk.
        u = mm(xs, "wf1") + B("bu")
        x1 = jnp.maximum(u[:, :H], 0.0)                       # (NB, H)

        # ---- GRUCell: two packed gate matmuls (K = H) -----------------------
        gi = mm(x1, "wi") + B("bgi")      # [b_ir+b_hr | b_iz+b_hz | b_in]
        gh = mm(h0, "wh")                 # b_hn applied inside the n gate
        rz = jax.nn.sigmoid(gi[:, :2 * H] + gh[:, :2 * H])
        r = rz[:, :H]
        z = rz[:, H:2 * H]
        bhn = b_ref[_BIAS_ROWS["bhn"]:_BIAS_ROWS["bhn"] + 1, :H]
        n = jnp.tanh(gi[:, 2 * H:3 * H] + r * (gh[:, 2 * H:3 * H] + bhn))
        h = (1.0 - z) * n + z * h0                            # (NB, H) f32

        # ---- dueling head: fc2 folded; shared ReLU over [a1 | v1] -----------
        qf = mm(h, "w2q")[:, :2 * E]        # lanes [E,2E) are exactly zero
        t = jnp.maximum(u[:, H:H + 2 * E] + qf, 0.0)          # [a1 | v1]
        a1 = t[:, :E]
        v1 = t[:, E:2 * E]
        a2 = jnp.maximum(mm(a1, "wn2") + B("bn2"), 0.0)[:, :E]
        a3 = jnp.maximum(mm(a2, "wn3") + B("bn3"), 0.0)[:, :E]
        # Wn4 / Wv2 / by were packed with their columns at lanes [H, H+A),
        # so y is already in its final lane position, zero elsewhere.
        y = mm(a3, "wn4") + mm(v1, "wv2") + B("by")

        # ---- single lane-dense output: [h | y | 0] --------------------------
        hz = jnp.concatenate(
            [h, jnp.zeros((h.shape[0], _LANES - H), f32)], axis=-1)
        out_ref[...] = hz + y

    return kernel


# ----------------------------------------------------------------------------
# Parameter construction / packing (done once, outside the per-step hot path)
# ----------------------------------------------------------------------------
def init_params(key, input_shape, input_shape_all, rnn_hidden_dim, n_actions,
                embed_dim):
    """Deterministic parameter init. All weights stored as (in, out)."""
    def lin(k, fan_in, fan_out):
        kw, kb = jax.random.split(k)
        bound = 1.0 / jnp.sqrt(jnp.float32(fan_in))
        w = jax.random.uniform(kw, (fan_in, fan_out), jnp.float32, -bound, bound)
        b = jax.random.uniform(kb, (1, fan_out), jnp.float32, -bound, bound)
        return w, b

    keys = jax.random.split(key, 16)
    H, A, E = rnn_hidden_dim, n_actions, embed_dim
    p = {}
    p["w1"], p["b1"] = lin(keys[0], input_shape, H)
    p["w2"], p["b2"] = lin(keys[1], H, A)
    for i, g in enumerate(("r", "z", "n")):
        p[f"wi{g}"], p[f"bi{g}"] = lin(keys[2 + i], H, H)
        p[f"wh{g}"], p[f"bh{g}"] = lin(keys[5 + i], H, H)
    wn1, p["bn1"] = lin(keys[8], input_shape_all + A, E)
    p["wn1s"] = wn1[:input_shape_all]     # (S, E)
    p["wn1q"] = wn1[input_shape_all:]     # (A, E)
    p["wn2"], p["bn2"] = lin(keys[9], E, E)
    p["wn3"], p["bn3"] = lin(keys[10], E, E)
    p["wn4"], p["bn4"] = lin(keys[11], E, A)
    p["wv1"], p["bv1"] = lin(keys[12], input_shape_all, E)
    p["wv2"], p["bv2"] = lin(keys[13], E, A)
    return p


def pack_params(p, *, input_shape, input_shape_all, rnn_hidden_dim, n_actions,
                embed_dim, compute_dtype=jnp.bfloat16):
    """Fold/fuse and pack all parameters into one weight slab + one bias slab."""
    H, A, E, S, Ein = rnn_hidden_dim, n_actions, embed_dim, input_shape_all, input_shape
    assert H % 8 == 0 and E % 8 == 0, "H and E must be multiples of 8"
    assert Ein + S <= _LANES, "x and s must pack into one 128-lane tile"
    assert 3 * H <= _LANES, "packed GRU gates must fit one 128-lane tile"
    assert H + 2 * E <= _LANES, "fused [x1|a1|v1] must fit one 128-lane tile"
    assert H + A <= _LANES, "combined [h|y] output must fit one 128-lane tile"
    # TODO(synk): generalize the lane packing (wider slabs) for larger configs.

    layout, total_rows = _make_layout(H, E)

    def put(slab, name, mat, row_off=0, col_off=0):
        base, rows = layout[name]
        assert row_off + mat.shape[0] <= rows
        assert col_off + mat.shape[1] <= _LANES
        return slab.at[base + row_off:base + row_off + mat.shape[0],
                       col_off:col_off + mat.shape[1]].set(mat)

    w2q = p["w2"] @ p["wn1q"]                       # exact algebraic fc2 fold
    w = jnp.zeros((total_rows, _LANES), jnp.float32)
    # fused first layer: rows follow the xs-slab lane layout [x | s]
    w = put(w, "wf1", p["w1"], row_off=0, col_off=0)                 # -> [0,H)
    w = put(w, "wf1", jnp.concatenate([p["wn1s"], p["wv1"]], axis=1),
            row_off=Ein, col_off=H)                                  # -> [H,H+2E)
    w = put(w, "wh", jnp.concatenate([p["whr"], p["whz"], p["whn"]], axis=1))
    w = put(w, "wi", jnp.concatenate([p["wir"], p["wiz"], p["win"]], axis=1))
    w = put(w, "w2q", w2q)
    w = put(w, "wn2", p["wn2"])
    w = put(w, "wn3", p["wn3"])
    w = put(w, "wn4", p["wn4"], col_off=H)          # output lanes [H, H+A)
    w = put(w, "wv2", p["wv2"], col_off=H)          # output lanes [H, H+A)
    w_slab = w.astype(compute_dtype)

    def putb(slab, name, vec, col_off=0):
        r = _BIAS_ROWS[name]
        v = vec.reshape(-1)
        return slab.at[r, col_off:col_off + v.shape[0]].set(v)

    b = jnp.zeros((_N_BIAS_ROWS, _LANES), jnp.float32)
    b = putb(b, "bu", p["b1"])                                       # [0,H)
    b = putb(b, "bu", p["bn1"] + p["b2"] @ p["wn1q"], col_off=H)     # [H,H+E)
    b = putb(b, "bu", p["bv1"], col_off=H + E)                       # [H+E,H+2E)
    b = putb(b, "bgi", jnp.concatenate(
        [p["bir"] + p["bhr"], p["biz"] + p["bhz"], p["bin"]], axis=1))
    b = putb(b, "bhn", p["bhn"])
    b = putb(b, "bn2", p["bn2"])
    b = putb(b, "bn3", p["bn3"])
    b = putb(b, "by", p["bn4"] + p["bv2"], col_off=H)                # [H,H+A)
    return {"w_slab": w_slab, "b_slab": b}


# ----------------------------------------------------------------------------
# Forward wrapper
# ----------------------------------------------------------------------------
@functools.partial(jax.jit, static_argnames=("n_actions", "embed_dim", "row_block"))
def rnn_agent_forward(inputs, hidden_state, states, w_slab, b_slab, *,
                      n_actions, embed_dim, row_block=512):
    """inputs: (b,a,Ein); hidden_state: (b,a,H); states: (b,a,S)."""
    b, a, e_in = inputs.shape
    H = hidden_state.shape[-1]
    S = states.shape[-1]
    E = embed_dim
    A = n_actions
    N = b * a

    layout, total_rows = _make_layout(H, E)
    assert w_slab.shape == (total_rows, _LANES), w_slab.shape
    assert b_slab.shape == (_N_BIAS_ROWS, _LANES), b_slab.shape
    assert e_in + S <= _LANES and H + A <= _LANES

    # Row block: multiple of 16 (bf16 sublane packing), at most row_block, and
    # capped at ceil(N/2) so the grid has >= 2 "parallel" steps whenever N is
    # large enough (both v7x TensorCores get work; no effect on v5e/v6e).
    half = _round_up(max(-(-N // 2), _ROW_ALIGN), _ROW_ALIGN)
    NB = max(_ROW_ALIGN, min(_round_up(row_block, _ROW_ALIGN), half))
    N_pad = _round_up(N, NB)

    # Compact activation inputs:
    #   xs: bf16 (N_pad,128) = [x | s | 0]   (x/s only ever feed bf16 matmuls)
    #   h0: f32  (N_pad,H)                   (stays f32 for the gate math)
    xs = jnp.zeros((N_pad, _LANES), jnp.bfloat16)
    xs = xs.at[:N, :e_in].set(inputs.reshape(N, e_in).astype(jnp.bfloat16))
    xs = xs.at[:N, e_in:e_in + S].set(states.reshape(N, S).astype(jnp.bfloat16))
    h0 = jnp.zeros((N_pad, H), jnp.float32)
    h0 = h0.at[:N, :].set(hidden_state.reshape(N, H).astype(jnp.float32))

    kernel = _make_kernel(H, E, layout, w_slab.dtype)

    cost = pl.CostEstimate(
        flops=2 * N_pad * _LANES * total_rows,
        transcendentals=3 * N_pad * H,
        bytes_accessed=(N_pad * (2 * _LANES + 4 * H + 4 * _LANES)
                        + total_rows * _LANES * w_slab.dtype.itemsize
                        + _N_BIAS_ROWS * _LANES * 4),
    )

    out = pl.pallas_call(
        kernel,
        grid=(N_pad // NB,),
        in_specs=[
            pl.BlockSpec((NB, _LANES), lambda i: (i, 0)),            # xs (bf16)
            pl.BlockSpec((NB, H), lambda i: (i, 0)),                 # h0 (f32)
            pl.BlockSpec((total_rows, _LANES), lambda i: (0, 0)),    # weights
            pl.BlockSpec((_N_BIAS_ROWS, _LANES), lambda i: (0, 0)),  # biases
        ],
        out_specs=pl.BlockSpec((NB, _LANES), lambda i: (i, 0)),      # [h | y | 0]
        out_shape=jax.ShapeDtypeStruct((N_pad, _LANES), jnp.float32),
        compiler_params=pltpu.CompilerParams(
            dimension_semantics=("parallel",)),
        cost_estimate=cost,
    )(xs, h0, w_slab, b_slab)

    h_out = out[:N, :H].reshape(b, a, H)
    y_out = out[:N, H:H + A].reshape(b, a, A)
    return y_out, h_out


# ----------------------------------------------------------------------------
# Pure-JAX f32 reference (mirrors the PyTorch module exactly)
# ----------------------------------------------------------------------------
def reference_forward(inputs, hidden_state, states, p, H, A):
    b, a, e = inputs.shape
    x = inputs.reshape(-1, e)
    h0 = hidden_state.reshape(-1, H)
    s = states.reshape(b * a, -1)
    x1 = jax.nn.relu(x @ p["w1"] + p["b1"])
    r = jax.nn.sigmoid(x1 @ p["wir"] + p["bir"] + h0 @ p["whr"] + p["bhr"])
    z = jax.nn.sigmoid(x1 @ p["wiz"] + p["biz"] + h0 @ p["whz"] + p["bhz"])
    n = jnp.tanh(x1 @ p["win"] + p["bin"] + r * (h0 @ p["whn"] + p["bhn"]))
    h = (1.0 - z) * n + z * h0
    q = h @ p["w2"] + p["b2"]
    a1 = jax.nn.relu(s @ p["wn1s"] + q @ p["wn1q"] + p["bn1"])
    a2 = jax.nn.relu(a1 @ p["wn2"] + p["bn2"])
    a3 = jax.nn.relu(a2 @ p["wn3"] + p["bn3"])
    advs = a3 @ p["wn4"] + p["bn4"]
    v1 = jax.nn.relu(s @ p["wv1"] + p["bv1"])
    vs = v1 @ p["wv2"] + p["bv2"]
    y = advs + vs
    return y.reshape(b, a, -1), h.reshape(b, a, -1)


if __name__ == "__main__":
    # Small shapes consistent with the module's forward.
    b, a = 2, 4                       # batch, agents
    input_shape = 32                  # per-agent obs features (e)
    input_shape_all = 48              # global state features
    rnn_hidden_dim = 32
    n_actions = 8
    embed_dim = 32                    # args.central_mixing_embed_dim

    key = jax.random.PRNGKey(0)
    k_in, k_h, k_s, k_p = jax.random.split(key, 4)
    inputs = jax.random.normal(k_in, (b, a, input_shape), jnp.float32)
    hidden_state = jax.random.normal(k_h, (b, a, rnn_hidden_dim), jnp.float32)
    states = jax.random.normal(k_s, (b, a, input_shape_all), jnp.float32)

    params = init_params(k_p, input_shape, input_shape_all, rnn_hidden_dim,
                         n_actions, embed_dim)
    packed = pack_params(params, input_shape=input_shape,
                         input_shape_all=input_shape_all,
                         rnn_hidden_dim=rnn_hidden_dim,
                         n_actions=n_actions, embed_dim=embed_dim)

    y, h = rnn_agent_forward(inputs, hidden_state, states,
                             packed["w_slab"], packed["b_slab"],
                             n_actions=n_actions, embed_dim=embed_dim)
    jax.block_until_ready((y, h))
    assert y.shape == (b, a, n_actions), y.shape
    assert h.shape == (b, a, rnn_hidden_dim), h.shape

    # Sanity check vs. pure-JAX f32 reference (tolerance for bf16 matmul operands).
    y_ref, h_ref = reference_forward(inputs, hidden_state, states, params,
                                     rnn_hidden_dim, n_actions)
    err_y = float(jnp.max(jnp.abs(y - y_ref)))
    err_h = float(jnp.max(jnp.abs(h - h_ref)))
    assert err_y < 1e-1 and err_h < 1e-1, (err_y, err_h)

    # Larger batch: exercises grid > 1 (>= 2 steps so both v7x TCs get work).
    b2 = 16
    inputs2 = jax.random.normal(k_in, (b2, a, input_shape), jnp.float32)
    hidden2 = jax.random.normal(k_h, (b2, a, rnn_hidden_dim), jnp.float32)
    states2 = jax.random.normal(k_s, (b2, a, input_shape_all), jnp.float32)
    y2, h2 = rnn_agent_forward(inputs2, hidden2, states2,
                               packed["w_slab"], packed["b_slab"],
                               n_actions=n_actions, embed_dim=embed_dim)
    jax.block_until_ready((y2, h2))
    y2_ref, h2_ref = reference_forward(inputs2, hidden2, states2, params,
                                       rnn_hidden_dim, n_actions)
    assert float(jnp.max(jnp.abs(y2 - y2_ref))) < 1e-1
    assert float(jnp.max(jnp.abs(h2 - h2_ref))) < 1e-1

    print("KERNEL_OK")
</pallas_src>

<mosaic_0001>
module attributes {stable_mosaic.version = 11 : i64} {
  func.func @kernel(%arg0: i32, %arg1: memref<16x128xbf16, #tpu.memory_space<vmem>>, %arg2: memref<16x32xf32, #tpu.memory_space<vmem>>, %arg3: memref<352x128xbf16, #tpu.memory_space<vmem>>, %arg4: memref<8x128xf32, #tpu.memory_space<vmem>>, %arg5: memref<16x128xf32, #tpu.memory_space<vmem>>) attributes {dimension_semantics = [#tpu.dimension_semantics<parallel>], iteration_bounds = array<i64: 1>, scalar_prefetch = 0 : i64, scratch_operands = 0 : i64, tpu.core_type = #tpu.core_type<tc>, window_params = [{transform_indices = @transform_0, window_bounds = array<i64: 16, 128>}, {transform_indices = @transform_1, window_bounds = array<i64: 16, 32>}, {pipeline_mode = #tpu.pipeline_mode<synchronous>, transform_indices = @transform_2, window_bounds = array<i64: 352, 128>}, {pipeline_mode = #tpu.pipeline_mode<synchronous>, transform_indices = @transform_3, window_bounds = array<i64: 8, 128>}, {transform_indices = @transform_4, window_bounds = array<i64: 16, 128>}]} {
    %c0 = arith.constant 0 : index
    %c0_0 = arith.constant 0 : index
    %0 = vector.load %arg1[%c0, %c0_0] : memref<16x128xbf16, #tpu.memory_space<vmem>>, vector<16x128xbf16>
    %c0_1 = arith.constant 0 : index
    %c0_2 = arith.constant 0 : index
    %1 = vector.load %arg2[%c0_1, %c0_2] : memref<16x32xf32, #tpu.memory_space<vmem>>, vector<16x32xf32>
    %c0_3 = arith.constant 0 : index
    %c0_4 = arith.constant 0 : index
    %2 = vector.load %arg3[%c0_3, %c0_4] : memref<352x128xbf16, #tpu.memory_space<vmem>>, vector<128x128xbf16>
    %cst = arith.constant dense<0.000000e+00> : vector<16x128xf32>
    %3 = tpu.matmul %0, %2, %cst {dimension_numbers = #tpu.dot_dimension_numbers<[1], [0], [0], [1], [0, 0, 1, 1], [], []>} : vector<16x128xbf16>, vector<128x128xbf16>, vector<16x128xf32> -> vector<16x128xf32>
    %c0_5 = arith.constant 0 : index
    %c0_6 = arith.constant 0 : index
    %4 = vector.load %arg4[%c0_5, %c0_6] : memref<8x128xf32, #tpu.memory_space<vmem>>, vector<1x128xf32>
    %5 = vector.broadcast %4 : vector<1x128xf32> to vector<16x128xf32>
    %6 = arith.addf %3, %5 : vector<16x128xf32>
    %7 = vector.extract_strided_slice %6 {offsets = [0, 0], sizes = [16, 32], strides = [1, 1]} : vector<16x128xf32> to vector<16x32xf32>
    %cst_7 = arith.constant 0.000000e+00 : f32
    %8 = vector.broadcast %cst_7 : f32 to vector<16x32xf32>
    %9 = arith.maximumf %7, %8 : vector<16x32xf32>
    %10 = arith.truncf %9 : vector<16x32xf32> to vector<16x32xbf16>
    %c160 = arith.constant 160 : index
    %c0_8 = arith.constant 0 : index
    %11 = vector.load %arg3[%c160, %c0_8] : memref<352x128xbf16, #tpu.memory_space<vmem>>, vector<32x128xbf16>
    %cst_9 = arith.constant dense<0.000000e+00> : vector<16x128xf32>
    %12 = tpu.matmul %10, %11, %cst_9 {dimension_numbers = #tpu.dot_dimension_numbers<[1], [0], [0], [1], [0, 0, 1, 1], [], []>} : vector<16x32xbf16>, vector<32x128xbf16>, vector<16x128xf32> -> vector<16x128xf32>
    %c1 = arith.constant 1 : index
    %c0_10 = arith.constant 0 : index
    %13 = vector.load %arg4[%c1, %c0_10] : memref<8x128xf32, #tpu.memory_space<vmem>>, vector<1x128xf32>
    %14 = vector.broadcast %13 : vector<1x128xf32> to vector<16x128xf32>
    %15 = arith.addf %12, %14 : vector<16x128xf32>
    %16 = arith.truncf %1 : vector<16x32xf32> to vector<16x32xbf16>
    %c128 = arith.constant 128 : index
    %c0_11 = arith.constant 0 : index
    %17 = vector.load %arg3[%c128, %c0_11] : memref<352x128xbf16, #tpu.memory_space<vmem>>, vector<32x128xbf16>
    %cst_12 = arith.constant dense<0.000000e+00> : vector<16x128xf32>
    %18 = tpu.matmul %16, %17, %cst_12 {dimension_numbers = #tpu.dot_dimension_numbers<[1], [0], [0], [1], [0, 0, 1, 1], [], []>} : vector<16x32xbf16>, vector<32x128xbf16>, vector<16x128xf32> -> vector<16x128xf32>
    %19 = vector.extract_strided_slice %15 {offsets = [0, 0], sizes = [16, 64], strides = [1, 1]} : vector<16x128xf32> to vector<16x64xf32>
    %20 = vector.extract_strided_slice %18 {offsets = [0, 0], sizes = [16, 64], strides = [1, 1]} : vector<16x128xf32> to vector<16x64xf32>
    %21 = arith.addf %19, %20 : vector<16x64xf32>
    %22 = arith.negf %21 : vector<16x64xf32>
    %23 = math.exp %22 : vector<16x64xf32>
    %cst_13 = arith.constant 1.000000e+00 : f32
    %24 = vector.broadcast %cst_13 : f32 to vector<16x64xf32>
    %25 = arith.addf %24, %23 : vector<16x64xf32>
    %26 = arith.divf %24, %25 : vector<16x64xf32>
    %27 = vector.extract_strided_slice %26 {offsets = [0, 0], sizes = [16, 32], strides = [1, 1]} : vector<16x64xf32> to vector<16x32xf32>
    %28 = vector.extract_strided_slice %26 {offsets = [0, 32], sizes = [16, 32], strides = [1, 1]} : vector<16x64xf32> to vector<16x32xf32>
    %c2 = arith.constant 2 : index
    %c0_14 = arith.constant 0 : index
    %29 = vector.load %arg4[%c2, %c0_14] : memref<8x128xf32, #tpu.memory_space<vmem>>, vector<1x32xf32>
    %30 = vector.extract_strided_slice %15 {offsets = [0, 64], sizes = [16, 32], strides = [1, 1]} : vector<16x128xf32> to vector<16x32xf32>
    %31 = vector.extract_strided_slice %18 {offsets = [0, 64], sizes = [16, 32], strides = [1, 1]} : vector<16x128xf32> to vector<16x32xf32>
    %32 = vector.broadcast %29 : vector<1x32xf32> to vector<16x32xf32>
    %33 = arith.addf %31, %32 : vector<16x32xf32>
    %34 = arith.mulf %27, %33 : vector<16x32xf32>
    %35 = arith.addf %30, %34 : vector<16x32xf32>
    %36 = math.tanh %35 : vector<16x32xf32>
    %cst_15 = arith.constant 1.000000e+00 : f32
    %37 = vector.broadcast %cst_15 : f32 to vector<16x32xf32>
    %38 = arith.subf %37, %28 : vector<16x32xf32>
    %39 = arith.mulf %38, %36 : vector<16x32xf32>
    %40 = arith.mulf %28, %1 : vector<16x32xf32>
    %41 = arith.addf %39, %40 : vector<16x32xf32>
    %42 = arith.truncf %41 : vector<16x32xf32> to vector<16x32xbf16>
    %c192 = arith.constant 192 : index
    %c0_16 = arith.constant 0 : index
    %43 = vector.load %arg3[%c192, %c0_16] : memref<352x128xbf16, #tpu.memory_space<vmem>>, vector<32x128xbf16>
    %cst_17 = arith.constant dense<0.000000e+00> : vector<16x128xf32>
    %44 = tpu.matmul %42, %43, %cst_17 {dimension_numbers = #tpu.dot_dimension_numbers<[1], [0], [0], [1], [0, 0, 1, 1], [], []>} : vector<16x32xbf16>, vector<32x128xbf16>, vector<16x128xf32> -> vector<16x128xf32>
    %45 = vector.extract_strided_slice %44 {offsets = [0, 0], sizes = [16, 64], strides = [1, 1]} : vector<16x128xf32> to vector<16x64xf32>
    %46 = vector.extract_strided_slice %6 {offsets = [0, 32], sizes = [16, 64], strides = [1, 1]} : vector<16x128xf32> to vector<16x64xf32>
    %47 = arith.addf %46, %45 : vector<16x64xf32>
    %cst_18 = arith.constant 0.000000e+00 : f32
    %48 = vector.broadcast %cst_18 : f32 to vector<16x64xf32>
    %49 = arith.maximumf %47, %48 : vector<16x64xf32>
    %50 = vector.extract_strided_slice %49 {offsets = [0, 0], sizes = [16, 32], strides = [1, 1]} : vector<16x64xf32> to vector<16x32xf32>
    %51 = vector.extract_strided_slice %49 {offsets = [0, 32], sizes = [16, 32], strides = [1, 1]} : vector<16x64xf32> to vector<16x32xf32>
    %52 = arith.truncf %50 : vector<16x32xf32> to vector<16x32xbf16>
    %c224 = arith.constant 224 : index
    %c0_19 = arith.constant 0 : index
    %53 = vector.load %arg3[%c224, %c0_19] : memref<352x128xbf16, #tpu.memory_space<vmem>>, vector<32x128xbf16>
    %cst_20 = arith.constant dense<0.000000e+00> : vector<16x128xf32>
    %54 = tpu.matmul %52, %53, %cst_20 {dimension_numbers = #tpu.dot_dimension_numbers<[1], [0], [0], [1], [0, 0, 1, 1], [], []>} : vector<16x32xbf16>, vector<32x128xbf16>, vector<16x128xf32> -> vector<16x128xf32>
    %c3 = arith.constant 3 : index
    %c0_21 = arith.constant 0 : index
    %55 = vector.load %arg4[%c3, %c0_21] : memref<8x128xf32, #tpu.memory_space<vmem>>, vector<1x128xf32>
    %56 = vector.broadcast %55 : vector<1x128xf32> to vector<16x128xf32>
    %57 = arith.addf %54, %56 : vector<16x128xf32>
    %cst_22 = arith.constant 0.000000e+00 : f32
    %58 = vector.broadcast %cst_22 : f32 to vector<16x128xf32>
    %59 = arith.maximumf %57, %58 : vector<16x128xf32>
    %60 = vector.extract_strided_slice %59 {offsets = [0, 0], sizes = [16, 32], strides = [1, 1]} : vector<16x128xf32> to vector<16x32xf32>
    %61 = arith.truncf %60 : vector<16x32xf32> to vector<16x32xbf16>
    %c256 = arith.constant 256 : index
    %c0_23 = arith.constant 0 : index
    %62 = vector.load %arg3[%c256, %c0_23] : memref<352x128xbf16, #tpu.memory_space<vmem>>, vector<32x128xbf16>
    %cst_24 = arith.constant dense<0.000000e+00> : vector<16x128xf32>
    %63 = tpu.matmul %61, %62, %cst_24 {dimension_numbers = #tpu.dot_dimension_numbers<[1], [0], [0], [1], [0, 0, 1, 1], [], []>} : vector<16x32xbf16>, vector<32x128xbf16>, vector<16x128xf32> -> vector<16x128xf32>
    %c4 = arith.constant 4 : index
    %c0_25 = arith.constant 0 : index
    %64 = vector.load %arg4[%c4, %c0_25] : memref<8x128xf32, #tpu.memory_space<vmem>>, vector<1x128xf32>
    %65 = vector.broadcast %64 : vector<1x128xf32> to vector<16x128xf32>
    %66 = arith.addf %63, %65 : vector<16x128xf32>
    %cst_26 = arith.constant 0.000000e+00 : f32
    %67 = vector.broadcast %cst_26 : f32 to vector<16x128xf32>
    %68 = arith.maximumf %66, %67 : vector<16x128xf32>
    %69 = vector.extract_strided_slice %68 {offsets = [0, 0], sizes = [16, 32], strides = [1, 1]} : vector<16x128xf32> to vector<16x32xf32>
    %70 = arith.truncf %69 : vector<16x32xf32> to vector<16x32xbf16>
    %c288 = arith.constant 288 : index
    %c0_27 = arith.constant 0 : index
    %71 = vector.load %arg3[%c288, %c0_27] : memref<352x128xbf16, #tpu.memory_space<vmem>>, vector<32x128xbf16>
    %cst_28 = arith.constant dense<0.000000e+00> : vector<16x128xf32>
    %72 = tpu.matmul %70, %71, %cst_28 {dimension_numbers = #tpu.dot_dimension_numbers<[1], [0], [0], [1], [0, 0, 1, 1], [], []>} : vector<16x32xbf16>, vector<32x128xbf16>, vector<16x128xf32> -> vector<16x128xf32>
    %73 = arith.truncf %51 : vector<16x32xf32> to vector<16x32xbf16>
    %c320 = arith.constant 320 : index
    %c0_29 = arith.constant 0 : index
    %74 = vector.load %arg3[%c320, %c0_29] : memref<352x128xbf16, #tpu.memory_space<vmem>>, vector<32x128xbf16>
    %cst_30 = arith.constant dense<0.000000e+00> : vector<16x128xf32>
    %75 = tpu.matmul %73, %74, %cst_30 {dimension_numbers = #tpu.dot_dimension_numbers<[1], [0], [0], [1], [0, 0, 1, 1], [], []>} : vector<16x32xbf16>, vector<32x128xbf16>, vector<16x128xf32> -> vector<16x128xf32>
    %76 = arith.addf %72, %75 : vector<16x128xf32>
    %c5 = arith.constant 5 : index
    %c0_31 = arith.constant 0 : index
    %77 = vector.load %arg4[%c5, %c0_31] : memref<8x128xf32, #tpu.memory_space<vmem>>, vector<1x128xf32>
    %78 = vector.broadcast %77 : vector<1x128xf32> to vector<16x128xf32>
    %79 = arith.addf %76, %78 : vector<16x128xf32>
    %cst_32 = arith.constant 0.000000e+00 : f32
    %80 = vector.broadcast %cst_32 : f32 to vector<16x96xf32>
    %81 = tpu.concatenate %41, %80 in 1 : vector<16x32xf32>, vector<16x96xf32> -> vector<16x128xf32>
    %82 = arith.addf %81, %79 : vector<16x128xf32>
    %c0_33 = arith.constant 0 : index
    %c0_34 = arith.constant 0 : index
    %83 = vector.load %arg5[%c0_33, %c0_34] : memref<16x128xf32, #tpu.memory_space<vmem>>, vector<16x128xf32>
    tpu.vector_store %arg5[%c0_33, %c0_34], %82 {strides = array<i32>} : memref<16x128xf32, #tpu.memory_space<vmem>>, vector<16x128xf32>,
    return
  }
  func.func @transform_0(%arg0: i32) -> (i32, i32) {
    %c0_i32 = arith.constant 0 : i32
    %c0_i32_0 = arith.constant 0 : i32
    return %arg0, %c0_i32 : i32, i32
  }
  func.func @transform_1(%arg0: i32) -> (i32, i32) {
    %c0_i32 = arith.constant 0 : i32
    %c0_i32_0 = arith.constant 0 : i32
    return %arg0, %c0_i32 : i32, i32
  }
  func.func @transform_2(%arg0: i32) -> (i32, i32) {
    %c0_i32 = arith.constant 0 : i32
    %c0_i32_0 = arith.constant 0 : i32
    %c0_i32_1 = arith.constant 0 : i32
    return %c0_i32, %c0_i32_0 : i32, i32
  }
  func.func @transform_3(%arg0: i32) -> (i32, i32) {
    %c0_i32 = arith.constant 0 : i32
    %c0_i32_0 = arith.constant 0 : i32
    %c0_i32_1 = arith.constant 0 : i32
    return %c0_i32, %c0_i32_0 : i32, i32
  }
  func.func @transform_4(%arg0: i32) -> (i32, i32) {
    %c0_i32 = arith.constant 0 : i32
    %c0_i32_0 = arith.constant 0 : i32
    return %arg0, %c0_i32 : i32, i32
  }
}

</mosaic_0001>

<llo_original>
// kernel: rnn_agent_forward.1
$region0: #{rnn_agent_forward.1}
  #allocation0 [shape = 'u32[]', space=smem, size = 0x4, offset = 0x4, fixed_abs, tag = 'smem constant byte address 0x4 - core index']
  #allocation1 [shape = 'u32[144,128]{1,0:T(1,128)}', space=vmem, size = 0x12000, scoped, tag = 'internal scratch']
  %s0 = inlined_call_operand.vmem [shape: bf16[16,128], index: 0, kind: input, shape index: {}]
  %s1 = inlined_call_operand.vmem [shape: f32[16,32], index: 1, kind: input, shape index: {}]
  %s2 = inlined_call_operand.hbm [shape: bf16[352,128], index: 2, kind: input, shape index: {}]
  %s3 = inlined_call_operand.vmem [shape: f32[8,128], index: 3, kind: input, shape index: {}]
  %s4 = inlined_call_operand.vmem [shape: f32[16,128], index: 4, kind: output, shape index: {}]
  %s5 = sld [smem:[#allocation0]]
  $region30: #{rnn_agent_forward.1} parent=0
    _
  %s7 = ssub.s32 1, %s5
  %s8 = scalar_select 0, %s7, %s5
  $region1: #{rnn_agent_forward.1} parent=0
    #allocation2 [shape = 'u8[90112]{0}', space=vmem, size = 0x16000, scoped, tag = 'input window, operand 2, single buffered']
    #allocation3 [shape = 's32[1]{0}', space=sflag, size = 0x4, scoped, tag = 'scoped memory for rnn_agent_forward.1']
    %9 = vsyncpa [#allocation3], 0
    // Predicated region
    $region2: #{rnn_agent_forward.1} parent=1 // pred_check
      _
    $region3: #{rnn_agent_forward.1} parent=1 // pred_check_branch
      %11 = sbr.rel (0) target = $region5
    $region4: #{rnn_agent_forward.1} parent=1 // pred_region
      _
    $region5: #{rnn_agent_forward.1} parent=1 // pred_fallthru
      _
    // Predicated region
    $region6: #{rnn_agent_forward.1} parent=1 // pred_check
      _
    $region7: #{rnn_agent_forward.1} parent=1 // pred_check_branch
      %13 = sbr.rel (0) target = $region9
    $region8: #{rnn_agent_forward.1} parent=1 // pred_region
      _
    $region9: #{rnn_agent_forward.1} parent=1 // pred_fallthru
      _
    // Predicated region
    $region10: #{rnn_agent_forward.1} parent=1 // pred_check
      _
    $region11: #{rnn_agent_forward.1} parent=1 // pred_check_branch
      %15 = sbr.rel (0) target = $region13
    $region12: #{rnn_agent_forward.1} parent=1 // pred_region
      %s17 = ssub.s32 2816, 2816
      %18 = vsyncadd [#allocation3], %s17
      %s19 = sshll.u32 [#allocation2], 4
      %s20 = int_to_ptr.vmem [resolvable:$true] %s19
      %25 = dma.hbm_to_vmem [thread:$0]  %s2, 2816, %s20, [#allocation3], 64, 64, 4
    $region13: #{rnn_agent_forward.1} parent=1 // pred_fallthru
      _
    // Predicated region
    $region14: #{rnn_agent_forward.1} parent=1 // pred_check
      _
    $region15: #{rnn_agent_forward.1} parent=1 // pred_check_branch
      %27 = sbr.rel (0) target = $region17
    $region16: #{rnn_agent_forward.1} parent=1 // pred_region
      _
    $region17: #{rnn_agent_forward.1} parent=1 // pred_fallthru
      _
    // Predicated region
    $region18: #{rnn_agent_forward.1} parent=1 // pred_check
      _
    $region19: #{rnn_agent_forward.1} parent=1 // pred_check_branch
      %29 = sbr.rel (0) target = $region21
    $region20: #{rnn_agent_forward.1} parent=1 // pred_region
      %30 = dma.done [#allocation3], 2816
    $region21: #{rnn_agent_forward.1} parent=1 // pred_fallthru
      _
    %v32 = vld [vmem:[%s0] sm:$0xf]
    %v33 = vld [vmem:[%s0 + $0x4] sm:$0xf]
    %v34 = vld [vmem:[%s1] sm:$0xff]
    %v35 = vld [vmem:[%s1 + $0x8] sm:$0xff]
    %v36 = vld [vmem:[#allocation2] sm:$0xf]
    %v37 = vld [vmem:[#allocation2 + $0x4] sm:$0xf]
    %v38 = vld [vmem:[#allocation2 + $0x8] sm:$0xf]
    %v39 = vld [vmem:[#allocation2 + $0xc] sm:$0xf]
    %v40 = vld [vmem:[#allocation2 + $0x10] sm:$0xf]
    %v41 = vld [vmem:[#allocation2 + $0x14] sm:$0xf]
    %v42 = vld [vmem:[#allocation2 + $0x18] sm:$0xf]
    %v43 = vld [vmem:[#allocation2 + $0x1c] sm:$0xf]
    %v44 = vld [vmem:[#allocation2 + $0x20] sm:$0xf]
    %v45 = vld [vmem:[#allocation2 + $0x24] sm:$0xf]
    %v46 = vld [vmem:[#allocation2 + $0x28] sm:$0xf]
    %v47 = vld [vmem:[#allocation2 + $0x2c] sm:$0xf]
    %v48 = vld [vmem:[#allocation2 + $0x30] sm:$0xf]
    %v49 = vld [vmem:[#allocation2 + $0x34] sm:$0xf]
    %v50 = vld [vmem:[#allocation2 + $0x38] sm:$0xf]
    %v51 = vld [vmem:[#allocation2 + $0x3c] sm:$0xf]
    %v52 = vld [vmem:[%s3] sm:$0x1]
    %v53 = vlaneseq
    %v54 = vshrl.u32 %v53, 7
    %v55 = vsub.s32 0, %v54
    %v56 = vrot.slane %v52, %v55
    %v59 = vunpack.c.l.b16 %v32
    %v60 = vunpack.c.l.b16 %v33
    %v61 = vpack.c.b16 %v60, %v59
    %v79 = vunpack.c.l.b16 %v36
    %v80 = vunpack.c.l.b16 %v37
    %v81 = vunpack.c.l.b16 %v38
    %v82 = vunpack.c.l.b16 %v39
    %v83 = vunpack.c.l.b16 %v40
    %v84 = vunpack.c.l.b16 %v41
    %v85 = vunpack.c.l.b16 %v42
    %v86 = vunpack.c.l.b16 %v43
    %v87 = vunpack.c.l.b16 %v44
    %v88 = vunpack.c.l.b16 %v45
    %v89 = vunpack.c.l.b16 %v46
    %v90 = vunpack.c.l.b16 %v47
    %v91 = vunpack.c.l.b16 %v48
    %v92 = vunpack.c.l.b16 %v49
    %v93 = vunpack.c.l.b16 %v50
    %v94 = vunpack.c.l.b16 %v51
    %v95 = vpack.c.b16 %v80, %v79
    %v96 = vpack.c.b16 %v82, %v81
    %v97 = vpack.c.b16 %v84, %v83
    %v98 = vpack.c.b16 %v86, %v85
    %v99 = vpack.c.b16 %v88, %v87
    %v100 = vpack.c.b16 %v90, %v89
    %v101 = vpack.c.b16 %v92, %v91
    %v102 = vpack.c.b16 %v94, %v93
    %111 = vmatprep.subr.bf16.mxu0 0
    %112 = vmatpush1.bf16.msra.mxu0 %v102
    %113 = vmatprep.subr.bf16.mxu0 0
    %114 = vmatpush1.bf16.msra.mxu0 %v101
    %115 = vmatprep.subr.bf16.mxu0 0
    %116 = vmatpush1.bf16.msra.mxu0 %v100
    %117 = vmatprep.subr.bf16.mxu0 0
    %118 = vmatpush1.bf16.msra.mxu0 %v99
    %119 = vmatprep.subr.bf16.mxu0 0
    %120 = vmatpush1.bf16.msra.mxu0 %v98
    %121 = vmatprep.subr.bf16.mxu0 0
    %122 = vmatpush1.bf16.msra.mxu0 %v97
    %123 = vmatprep.subr.bf16.mxu0 0
    %124 = vmatpush1.bf16.msra.mxu0 %v96
    %125 = vmatprep.subr.bf16.mxu0 0
    %126 = vmatpush1.bf16.msra.mxu0 %v95
    %127 = vmatprep.subr.bf16.mxu0 0
    %128 = vmatpush2.bf16.msra.mxu0 0
    %129 = vmatprep.subr.bf16.mxu0 0
    %130 = vmatpush2.bf16.msra.mxu0 0
    %131 = vmatprep.subr.bf16.mxu0 0
    %132 = vmatpush2.bf16.msra.mxu0 0
    %133 = vmatprep.subr.bf16.mxu0 0
    %134 = vmatpush2.bf16.msra.mxu0 0
    %135 = vmatprep.subr.bf16.mxu0 0
    %136 = vmatpush2.bf16.msra.mxu0 0
    %137 = vmatprep.subr.bf16.mxu0 0
    %138 = vmatpush2.bf16.msra.mxu0 0
    %139 = vmatprep.subr.bf16.mxu0 0
    %140 = vmatpush2.bf16.msra.mxu0 0
    %141 = vmatprep.subr.bf16.mxu0 0
    %142 = vmatpush2.bf16.msra.mxu0 0
    %143 = vmatprep.mubr.bf16.mxu0 0
    %144 = vmatmul.mubr.bf16.gmra.mxu0 %v61
    %v145 = vpop.f32.mrf.mxu0
    %v146 = vadd.f32 %v56, %v145
    %v147 = vpop.f32.mrf.mxu0
    %v148 = vpop.f32.mrf.mxu0
    %v149 = vadd.f32 %v56, %v148
    %v150 = vpop.f32.mrf.mxu0
    %151 = vdwg.mxu0
    %v152 = vmax.f32 %v146, 0.0
    %v153 = vmax.f32 %v149, 0.0
    %v154 = vpack.c.bf16 %v153, %v152
    %v155 = vld [vmem:[#allocation2 + $0x50] sm:$0xf]
    %v156 = vld [vmem:[#allocation2 + $0x54] sm:$0xf]
    %v157 = vld [vmem:[#allocation2 + $0x58] sm:$0xf]
    %v158 = vld [vmem:[#allocation2 + $0x5c] sm:$0xf]
    %v159 = vld [vmem:[%s3 + $0x1] sm:$0x1]
    %v160 = vlaneseq
    %v161 = vshrl.u32 %v160, 7
    %v162 = vsub.s32 0, %v161
    %v163 = vrot.slane %v159, %v162
    %v168 = vunpack.c.l.b16 %v155
    %v169 = vunpack.c.l.b16 %v156
    %v170 = vunpack.c.l.b16 %v157
    %v171 = vunpack.c.l.b16 %v158
    %v172 = vpack.c.b16 %v169, %v168
    %v173 = vpack.c.b16 %v171, %v170
    %vm176 = vcmask 261120
    %v178 = vsel %vm176, %v154, 0
    %180 = vmatprep.subr.bf16.mxu0 0
    %181 = vmatpush1.bf16.msra.mxu0 0
    %182 = vmatprep.subr.bf16.mxu0 0
    %183 = vmatpush1.bf16.msra.mxu0 0
    %184 = vmatprep.subr.bf16.mxu0 0
    %185 = vmatpush1.bf16.msra.mxu0 0
    %186 = vmatprep.subr.bf16.mxu0 0
    %187 = vmatpush1.bf16.msra.mxu0 0
    %188 = vmatprep.subr.bf16.mxu0 0
    %189 = vmatpush1.bf16.msra.mxu0 0
    %190 = vmatprep.subr.bf16.mxu0 0
    %191 = vmatpush1.bf16.msra.mxu0 0
    %192 = vmatprep.subr.bf16.mxu0 0
    %193 = vmatpush1.bf16.msra.mxu0 %v173
    %194 = vmatprep.subr.bf16.mxu0 0
    %195 = vmatpush1.bf16.msra.mxu0 %v172
    %196 = vmatprep.subr.bf16.mxu0 0
    %197 = vmatpush2.bf16.msra.mxu0 0
    %198 = vmatprep.subr.bf16.mxu0 0
    %199 = vmatpush2.bf16.msra.mxu0 0
    %200 = vmatprep.subr.bf16.mxu0 0
    %201 = vmatpush2.bf16.msra.mxu0 0
    %202 = vmatprep.subr.bf16.mxu0 0
    %203 = vmatpush2.bf16.msra.mxu0 0
    %204 = vmatprep.subr.bf16.mxu0 0
    %205 = vmatpush2.bf16.msra.mxu0 0
    %206 = vmatprep.subr.bf16.mxu0 0
    %207 = vmatpush2.bf16.msra.mxu0 0
    %208 = vmatprep.subr.bf16.mxu0 0
    %209 = vmatpush2.bf16.msra.mxu0 0
    %210 = vmatprep.subr.bf16.mxu0 0
    %211 = vmatpush2.bf16.msra.mxu0 0
    %212 = vmatprep.mubr.bf16.mxu0 0
    %213 = vmatmul.mubr.bf16.gmra.mxu0 %v178
    %v214 = vpop.f32.mrf.mxu0
    %v215 = vadd.f32 %v163, %v214
    %v216 = vpop.f32.mrf.mxu0
    %v217 = vpop.f32.mrf.mxu0
    %v218 = vadd.f32 %v163, %v217
    %v219 = vpop.f32.mrf.mxu0
    %220 = vdwg.mxu0
    %v221 = vpack.c.bf16 %v35, %v34
    %v222 = vld [vmem:[#allocation2 + $0x40] sm:$0xf]
    %v223 = vld [vmem:[#allocation2 + $0x44] sm:$0xf]
    %v224 = vld [vmem:[#allocation2 + $0x48] sm:$0xf]
    %v225 = vld [vmem:[#allocation2 + $0x4c] sm:$0xf]
    %v230 = vunpack.c.l.b16 %v222
    %v231 = vunpack.c.l.b16 %v223
    %v232 = vunpack.c.l.b16 %v224
    %v233 = vunpack.c.l.b16 %v225
    %v234 = vpack.c.b16 %v231, %v230
    %v235 = vpack.c.b16 %v233, %v232
    %v239 = vsel %vm176, %v221, 0
    %241 = vmatprep.subr.bf16.mxu0 0
    %242 = vmatpush1.bf16.msra.mxu0 0
    %243 = vmatprep.subr.bf16.mxu0 0
    %244 = vmatpush1.bf16.msra.mxu0 0
    %245 = vmatprep.subr.bf16.mxu0 0
    %246 = vmatpush1.bf16.msra.mxu0 0
    %247 = vmatprep.subr.bf16.mxu0 0
    %248 = vmatpush1.bf16.msra.mxu0 0
    %249 = vmatprep.subr.bf16.mxu0 0
    %250 = vmatpush1.bf16.msra.mxu0 0
    %251 = vmatprep.subr.bf16.mxu0 0
    %252 = vmatpush1.bf16.msra.mxu0 0
    %253 = vmatprep.subr.bf16.mxu0 0
    %254 = vmatpush1.bf16.msra.mxu0 %v235
    %255 = vmatprep.subr.bf16.mxu0 0
    %256 = vmatpush1.bf16.msra.mxu0 %v234
    %257 = vmatprep.subr.bf16.mxu0 0
    %258 = vmatpush2.bf16.msra.mxu0 0
    %259 = vmatprep.subr.bf16.mxu0 0
    %260 = vmatpush2.bf16.msra.mxu0 0
    %261 = vmatprep.subr.bf16.mxu0 0
    %262 = vmatpush2.bf16.msra.mxu0 0
    %263 = vmatprep.subr.bf16.mxu0 0
    %264 = vmatpush2.bf16.msra.mxu0 0
    %265 = vmatprep.subr.bf16.mxu0 0
    %266 = vmatpush2.bf16.msra.mxu0 0
    %267 = vmatprep.subr.bf16.mxu0 0
    %268 = vmatpush2.bf16.msra.mxu0 0
    %269 = vmatprep.subr.bf16.mxu0 0
    %270 = vmatpush2.bf16.msra.mxu0 0
    %271 = vmatprep.subr.bf16.mxu0 0
    %272 = vmatpush2.bf16.msra.mxu0 0
    %273 = vmatprep.mubr.bf16.mxu0 0
    %274 = vmatmul.mubr.bf16.gmra.mxu0 %v239
    %v275 = vpop.f32.mrf.mxu0
    %v276 = vadd.f32 0.0, %v275
    %v277 = vpop.f32.mrf.mxu0
    %v278 = vpop.f32.mrf.mxu0
    %v279 = vadd.f32 0.0, %v278
    %v280 = vpop.f32.mrf.mxu0
    %281 = vdwg.mxu0
    %v282 = vadd.f32 %v215, %v276
    %v283 = vadd.f32 %v218, %v279
    %v284 = vxor.u32 %v282, 2147483648
    %v285 = vxor.u32 %v283, 2147483648
    %v286 = vmul.f32 %v284, 1.442695
    %v287 = vpow.pop %v286
    %v288 = vmul.f32 %v285, 1.442695
    %v289 = vpow.pop %v288
    %v290 = vadd.f32 %v287, 1.0
    %v291 = vadd.f32 %v289, 1.0
    %v292 = vrcp.pop %v290
    %v293 = vmul.f32 1.0, %v292
    %v294 = vrcp.pop %v291
    %v295 = vmul.f32 1.0, %v294
    %v296 = vld [vmem:[%s3 + $0x2] sm:$0x1]
    %v297 = vlaneseq
    %v298 = vshrl.u32 %v297, 7
    %v299 = vsub.s32 0, %v298
    %v300 = vrot.slane %v296, %v299
    %302 = vrot.lane.b32.xlu0 %v300, 64
    %v303 = vpop.permute.xlu0 %302
    %v305 = vadd.f32 %v276, %v303
    %v306 = vadd.f32 %v279, %v303
    %309 = vrot.lane.b32.xlu0 %v305, 64
    %v310 = vpop.permute.xlu0 %309
    %311 = vrot.lane.b32.xlu0 %v306, 64
    %v312 = vpop.permute.xlu0 %311
    %v315 = vmul.f32 %v293, %v310
    %v316 = vmul.f32 %v295, %v312
    %319 = vrot.lane.b32.xlu0 %v315, 64
    %v320 = vpop.permute.xlu0 %319
    %321 = vrot.lane.b32.xlu0 %v316, 64
    %v322 = vpop.permute.xlu0 %321
    %v325 = vadd.f32 %v215, %v320
    %v326 = vadd.f32 %v218, %v322
    %v327 = vtanh.pop %v325
    %v328 = vtanh.pop %v326
    %v329 = vsub.f32 1.0, %v293
    %v330 = vsub.f32 1.0, %v295
    %333 = vrot.lane.b32.xlu0 %v327, 96
    %v334 = vpop.permute.xlu0 %333
    %335 = vrot.lane.b32.xlu0 %v328, 96
    %v336 = vpop.permute.xlu0 %335
    %v339 = vmul.f32 %v329, %v334
    %v340 = vmul.f32 %v330, %v336
    %343 = vrot.lane.b32.xlu0 %v34, 32
    %v344 = vpop.permute.xlu0 %343
    %345 = vrot.lane.b32.xlu0 %v35, 32
    %v346 = vpop.permute.xlu0 %345
    %v349 = vmul.f32 %v293, %v344
    %v350 = vmul.f32 %v295, %v346
    %v351 = vadd.f32 %v339, %v349
    %v352 = vadd.f32 %v340, %v350
    %v353 = vpack.c.bf16 %v352, %v351
    %v354 = vld [vmem:[#allocation2 + $0x60] sm:$0xf]
    %v355 = vld [vmem:[#allocation2 + $0x64] sm:$0xf]
    %v356 = vld [vmem:[#allocation2 + $0x68] sm:$0xf]
    %v357 = vld [vmem:[#allocation2 + $0x6c] sm:$0xf]
    %359 = vrot.lane.b32.xlu0 %v353, 96
    %v360 = vpop.permute.xlu0 %359
    %v365 = vunpack.c.l.b16 %v354
    %v366 = vunpack.c.l.b16 %v355
    %v367 = vunpack.c.l.b16 %v356
    %v368 = vunpack.c.l.b16 %v357
    %v369 = vpack.c.b16 %v366, %v365
    %v370 = vpack.c.b16 %v368, %v367
    %v374 = vsel %vm176, %v360, 0
    %376 = vmatprep.subr.bf16.mxu0 0
    %377 = vmatpush1.bf16.msra.mxu0 0
    %378 = vmatprep.subr.bf16.mxu0 0
    %379 = vmatpush1.bf16.msra.mxu0 0
    %380 = vmatprep.subr.bf16.mxu0 0
    %381 = vmatpush1.bf16.msra.mxu0 0
    %382 = vmatprep.subr.bf16.mxu0 0
    %383 = vmatpush1.bf16.msra.mxu0 0
    %384 = vmatprep.subr.bf16.mxu0 0
    %385 = vmatpush1.bf16.msra.mxu0 0
    %386 = vmatprep.subr.bf16.mxu0 0
    %387 = vmatpush1.bf16.msra.mxu0 0
    %388 = vmatprep.subr.bf16.mxu0 0
    %389 = vmatpush1.bf16.msra.mxu0 %v370
    %390 = vmatprep.subr.bf16.mxu0 0
    %391 = vmatpush1.bf16.msra.mxu0 %v369
    %392 = vmatprep.subr.bf16.mxu0 0
    %393 = vmatpush2.bf16.msra.mxu0 0
    %394 = vmatprep.subr.bf16.mxu0 0
    %395 = vmatpush2.bf16.msra.mxu0 0
    %396 = vmatprep.subr.bf16.mxu0 0
    %397 = vmatpush2.bf16.msra.mxu0 0
    %398 = vmatprep.subr.bf16.mxu0 0
    %399 = vmatpush2.bf16.msra.mxu0 0
    %400 = vmatprep.subr.bf16.mxu0 0
    %401 = vmatpush2.bf16.msra.mxu0 0
    %402 = vmatprep.subr.bf16.mxu0 0
    %403 = vmatpush2.bf16.msra.mxu0 0
    %404 = vmatprep.subr.bf16.mxu0 0
    %405 = vmatpush2.bf16.msra.mxu0 0
    %406 = vmatprep.subr.bf16.mxu0 0
    %407 = vmatpush2.bf16.msra.mxu0 0
    %408 = vmatprep.mubr.bf16.mxu0 0
    %409 = vmatmul.mubr.bf16.gmra.mxu0 %v374
    %v410 = vpop.f32.mrf.mxu0
    %v411 = vadd.f32 0.0, %v410
    %v412 = vpop.f32.mrf.mxu0
    %v413 = vpop.f32.mrf.mxu0
    %v414 = vadd.f32 0.0, %v413
    %v415 = vpop.f32.mrf.mxu0
    %416 = vdwg.mxu0
    %419 = vrot.lane.b32.xlu0 %v411, 32
    %v420 = vpop.permute.xlu0 %419
    %421 = vrot.lane.b32.xlu0 %v414, 32
    %v422 = vpop.permute.xlu0 %421
    %v425 = vadd.f32 %v146, %v420
    %v426 = vadd.f32 %v149, %v422
    %v427 = vmax.f32 %v425, 0.0
    %v428 = vmax.f32 %v426, 0.0
    %v429 = vpack.c.bf16 %v428, %v427
    %v430 = vld [vmem:[#allocation2 + $0x70] sm:$0xf]
    %v431 = vld [vmem:[#allocation2 + $0x74] sm:$0xf]
    %v432 = vld [vmem:[#allocation2 + $0x78] sm:$0xf]
    %v433 = vld [vmem:[#allocation2 + $0x7c] sm:$0xf]
    %v434 = vld [vmem:[%s3 + $0x3] sm:$0x1]
    %v435 = vlaneseq
    %v436 = vshrl.u32 %v435, 7
    %v437 = vsub.s32 0, %v436
    %v438 = vrot.slane %v434, %v437
    %440 = vrot.lane.b32.xlu0 %v429, 96
    %v441 = vpop.permute.xlu0 %440
    %v446 = vunpack.c.l.b16 %v430
    %v447 = vunpack.c.l.b16 %v431
    %v448 = vunpack.c.l.b16 %v432
    %v449 = vunpack.c.l.b16 %v433
    %v450 = vpack.c.b16 %v447, %v446
    %v451 = vpack.c.b16 %v449, %v448
    %v455 = vsel %vm176, %v441, 0
    %457 = vmatprep.subr.bf16.mxu0 0
    %458 = vmatpush1.bf16.msra.mxu0 0
    %459 = vmatprep.subr.bf16.mxu0 0
    %460 = vmatpush1.bf16.msra.mxu0 0
    %461 = vmatprep.subr.bf16.mxu0 0
    %462 = vmatpush1.bf16.msra.mxu0 0
    %463 = vmatprep.subr.bf16.mxu0 0
    %464 = vmatpush1.bf16.msra.mxu0 0
    %465 = vmatprep.subr.bf16.mxu0 0
    %466 = vmatpush1.bf16.msra.mxu0 0
    %467 = vmatprep.subr.bf16.mxu0 0
    %468 = vmatpush1.bf16.msra.mxu0 0
    %469 = vmatprep.subr.bf16.mxu0 0
    %470 = vmatpush1.bf16.msra.mxu0 %v451
    %471 = vmatprep.subr.bf16.mxu0 0
    %472 = vmatpush1.bf16.msra.mxu0 %v450
    %473 = vmatprep.subr.bf16.mxu0 0
    %474 = vmatpush2.bf16.msra.mxu0 0
    %475 = vmatprep.subr.bf16.mxu0 0
    %476 = vmatpush2.bf16.msra.mxu0 0
    %477 = vmatprep.subr.bf16.mxu0 0
    %478 = vmatpush2.bf16.msra.mxu0 0
    %479 = vmatprep.subr.bf16.mxu0 0
    %480 = vmatpush2.bf16.msra.mxu0 0
    %481 = vmatprep.subr.bf16.mxu0 0
    %482 = vmatpush2.bf16.msra.mxu0 0
    %483 = vmatprep.subr.bf16.mxu0 0
    %484 = vmatpush2.bf16.msra.mxu0 0
    %485 = vmatprep.subr.bf16.mxu0 0
    %486 = vmatpush2.bf16.msra.mxu0 0
    %487 = vmatprep.subr.bf16.mxu0 0
    %488 = vmatpush2.bf16.msra.mxu0 0
    %489 = vmatprep.mubr.bf16.mxu0 0
    %490 = vmatmul.mubr.bf16.gmra.mxu0 %v455
    %v491 = vpop.f32.mrf.mxu0
    %v492 = vadd.f32 %v438, %v491
    %v493 = vpop.f32.mrf.mxu0
    %v494 = vpop.f32.mrf.mxu0
    %v495 = vadd.f32 %v438, %v494
    %v496 = vpop.f32.mrf.mxu0
    %497 = vdwg.mxu0
    %v498 = vmax.f32 %v492, 0.0
    %v499 = vmax.f32 %v495, 0.0
    %v500 = vpack.c.bf16 %v499, %v498
    %v501 = vld [vmem:[#allocation2 + $0x80] sm:$0xf]
    %v502 = vld [vmem:[#allocation2 + $0x84] sm:$0xf]
    %v503 = vld [vmem:[#allocation2 + $0x88] sm:$0xf]
    %v504 = vld [vmem:[#allocation2 + $0x8c] sm:$0xf]
    %v505 = vld [vmem:[%s3 + $0x4] sm:$0x1]
    %v506 = vlaneseq
    %v507 = vshrl.u32 %v506, 7
    %v508 = vsub.s32 0, %v507
    %v509 = vrot.slane %v505, %v508
    %v514 = vunpack.c.l.b16 %v501
    %v515 = vunpack.c.l.b16 %v502
    %v516 = vunpack.c.l.b16 %v503
    %v517 = vunpack.c.l.b16 %v504
    %v518 = vpack.c.b16 %v515, %v514
    %v519 = vpack.c.b16 %v517, %v516
    %v523 = vsel %vm176, %v500, 0
    %525 = vmatprep.subr.bf16.mxu0 0
    %526 = vmatpush1.bf16.msra.mxu0 0
    %527 = vmatprep.subr.bf16.mxu0 0
    %528 = vmatpush1.bf16.msra.mxu0 0
    %529 = vmatprep.subr.bf16.mxu0 0
    %530 = vmatpush1.bf16.msra.mxu0 0
    %531 = vmatprep.subr.bf16.mxu0 0
    %532 = vmatpush1.bf16.msra.mxu0 0
    %533 = vmatprep.subr.bf16.mxu0 0
    %534 = vmatpush1.bf16.msra.mxu0 0
    %535 = vmatprep.subr.bf16.mxu0 0
    %536 = vmatpush1.bf16.msra.mxu0 0
    %537 = vmatprep.subr.bf16.mxu0 0
    %538 = vmatpush1.bf16.msra.mxu0 %v519
    %539 = vmatprep.subr.bf16.mxu0 0
    %540 = vmatpush1.bf16.msra.mxu0 %v518
    %541 = vmatprep.subr.bf16.mxu0 0
    %542 = vmatpush2.bf16.msra.mxu0 0
    %543 = vmatprep.subr.bf16.mxu0 0
    %544 = vmatpush2.bf16.msra.mxu0 0
    %545 = vmatprep.subr.bf16.mxu0 0
    %546 = vmatpush2.bf16.msra.mxu0 0
    %547 = vmatprep.subr.bf16.mxu0 0
    %548 = vmatpush2.bf16.msra.mxu0 0
    %549 = vmatprep.subr.bf16.mxu0 0
    %550 = vmatpush2.bf16.msra.mxu0 0
    %551 = vmatprep.subr.bf16.mxu0 0
    %552 = vmatpush2.bf16.msra.mxu0 0
    %553 = vmatprep.subr.bf16.mxu0 0
    %554 = vmatpush2.bf16.msra.mxu0 0
    %555 = vmatprep.subr.bf16.mxu0 0
    %556 = vmatpush2.bf16.msra.mxu0 0
    %557 = vmatprep.mubr.bf16.mxu0 0
    %558 = vmatmul.mubr.bf16.gmra.mxu0 %v523
    %v559 = vpop.f32.mrf.mxu0
    %v560 = vadd.f32 %v509, %v559
    %v561 = vpop.f32.mrf.mxu0
    %v562 = vpop.f32.mrf.mxu0
    %v563 = vadd.f32 %v509, %v562
    %v564 = vpop.f32.mrf.mxu0
    %565 = vdwg.mxu0
    %v566 = vmax.f32 %v560, 0.0
    %v567 = vmax.f32 %v563, 0.0
    %v568 = vpack.c.bf16 %v567, %v566
    %v569 = vld [vmem:[#allocation2 + $0x90] sm:$0xf]
    %v570 = vld [vmem:[#allocation2 + $0x94] sm:$0xf]
    %v571 = vld [vmem:[#allocation2 + $0x98] sm:$0xf]
    %v572 = vld [vmem:[#allocation2 + $0x9c] sm:$0xf]
    %v573 = vld [vmem:[#allocation2 + $0xa0] sm:$0xf]
    %v574 = vld [vmem:[#allocation2 + $0xa4] sm:$0xf]
    %v575 = vld [vmem:[#allocation2 + $0xa8] sm:$0xf]
    %v576 = vld [vmem:[#allocation2 + $0xac] sm:$0xf]
    %577 = vrot.lane.b32.xlu0 %v429, 64
    %v578 = vpop.permute.xlu0 %577
    %v583 = vunpack.c.l.b16 %v573
    %v584 = vunpack.c.l.b16 %v574
    %v585 = vunpack.c.l.b16 %v575
    %v586 = vunpack.c.l.b16 %v576
    %v587 = vpack.c.b16 %v584, %v583
    %v588 = vpack.c.b16 %v586, %v585
    %v592 = vsel %vm176, %v578, 0
    %594 = vmatprep.subr.bf16.mxu0 0
    %595 = vmatpush1.bf16.msra.mxu0 0
    %596 = vmatprep.subr.bf16.mxu0 0
    %597 = vmatpush1.bf16.msra.mxu0 0
    %598 = vmatprep.subr.bf16.mxu0 0
    %599 = vmatpush1.bf16.msra.mxu0 0
    %600 = vmatprep.subr.bf16.mxu0 0
    %601 = vmatpush1.bf16.msra.mxu0 0
    %602 = vmatprep.subr.bf16.mxu0 0
    %603 = vmatpush1.bf16.msra.mxu0 0
    %604 = vmatprep.subr.bf16.mxu0 0
    %605 = vmatpush1.bf16.msra.mxu0 0
    %606 = vmatprep.subr.bf16.mxu0 0
    %607 = vmatpush1.bf16.msra.mxu0 %v588
    %608 = vmatprep.subr.bf16.mxu0 0
    %609 = vmatpush1.bf16.msra.mxu0 %v587
    %610 = vmatprep.subr.bf16.mxu0 0
    %611 = vmatpush2.bf16.msra.mxu0 0
    %612 = vmatprep.subr.bf16.mxu0 0
    %613 = vmatpush2.bf16.msra.mxu0 0
    %614 = vmatprep.subr.bf16.mxu0 0
    %615 = vmatpush2.bf16.msra.mxu0 0
    %616 = vmatprep.subr.bf16.mxu0 0
    %617 = vmatpush2.bf16.msra.mxu0 0
    %618 = vmatprep.subr.bf16.mxu0 0
    %619 = vmatpush2.bf16.msra.mxu0 0
    %620 = vmatprep.subr.bf16.mxu0 0
    %621 = vmatpush2.bf16.msra.mxu0 0
    %622 = vmatprep.subr.bf16.mxu0 0
    %623 = vmatpush2.bf16.msra.mxu0 0
    %624 = vmatprep.subr.bf16.mxu0 0
    %625 = vmatpush2.bf16.msra.mxu0 0
    %626 = vmatprep.mubr.bf16.mxu0 0
    %627 = vmatmul.mubr.bf16.gmra.mxu0 %v592
    %v628 = vpop.f32.mrf.mxu0
    %v629 = vadd.f32 0.0, %v628
    %v630 = vpop.f32.mrf.mxu0
    %v631 = vpop.f32.mrf.mxu0
    %v632 = vadd.f32 0.0, %v631
    %v633 = vpop.f32.mrf.mxu0
    %634 = vdwg.mxu0
    %v639 = vunpack.c.l.b16 %v569
    %v640 = vunpack.c.l.b16 %v570
    %v641 = vunpack.c.l.b16 %v571
    %v642 = vunpack.c.l.b16 %v572
    %v643 = vpack.c.b16 %v640, %v639
    %v644 = vpack.c.b16 %v642, %v641
    %v648 = vsel %vm176, %v568, 0
    %650 = vmatprep.subr.bf16.mxu0 0
    %651 = vmatpush1.bf16.msra.mxu0 0
    %652 = vmatprep.subr.bf16.mxu0 0
    %653 = vmatpush1.bf16.msra.mxu0 0
    %654 = vmatprep.subr.bf16.mxu0 0
    %655 = vmatpush1.bf16.msra.mxu0 0
    %656 = vmatprep.subr.bf16.mxu0 0
    %657 = vmatpush1.bf16.msra.mxu0 0
    %658 = vmatprep.subr.bf16.mxu0 0
    %659 = vmatpush1.bf16.msra.mxu0 0
    %660 = vmatprep.subr.bf16.mxu0 0
    %661 = vmatpush1.bf16.msra.mxu0 0
    %662 = vmatprep.subr.bf16.mxu0 0
    %663 = vmatpush1.bf16.msra.mxu0 %v644
    %664 = vmatprep.subr.bf16.mxu0 0
    %665 = vmatpush1.bf16.msra.mxu0 %v643
    %666 = vmatprep.subr.bf16.mxu0 0
    %667 = vmatpush2.bf16.msra.mxu0 0
    %668 = vmatprep.subr.bf16.mxu0 0
    %669 = vmatpush2.bf16.msra.mxu0 0
    %670 = vmatprep.subr.bf16.mxu0 0
    %671 = vmatpush2.bf16.msra.mxu0 0
    %672 = vmatprep.subr.bf16.mxu0 0
    %673 = vmatpush2.bf16.msra.mxu0 0
    %674 = vmatprep.subr.bf16.mxu0 0
    %675 = vmatpush2.bf16.msra.mxu0 0
    %676 = vmatprep.subr.bf16.mxu0 0
    %677 = vmatpush2.bf16.msra.mxu0 0
    %678 = vmatprep.subr.bf16.mxu0 0
    %679 = vmatpush2.bf16.msra.mxu0 0
    %680 = vmatprep.subr.bf16.mxu0 0
    %681 = vmatpush2.bf16.msra.mxu0 0
    %682 = vmatprep.mubr.bf16.mxu0 0
    %683 = vmatmul.mubr.bf16.gmra.mxu0 %v648
    %v684 = vpop.f32.mrf.mxu0
    %v685 = vadd.f32 %v629, %v684
    %v686 = vpop.f32.mrf.mxu0
    %v687 = vpop.f32.mrf.mxu0
    %v688 = vadd.f32 %v632, %v687
    %v689 = vpop.f32.mrf.mxu0
    %690 = vdwg.mxu0
    %v691 = vld [vmem:[%s3 + $0x5] sm:$0x1]
    %v692 = vlaneseq
    %v693 = vshrl.u32 %v692, 7
    %v694 = vsub.s32 0, %v693
    %v695 = vrot.slane %v691, %v694
    %v696 = vadd.f32 %v685, %v695
    %v697 = vadd.f32 %v688, %v695
    %700 = vrot.lane.b32.xlu0 %v351, 96
    %v701 = vpop.permute.xlu0 %700
    %702 = vrot.lane.b32.xlu0 %v352, 96
    %v703 = vpop.permute.xlu0 %702
    %v706 = vsel %vm176, %v701, 0.0
    %v707 = vsel %vm176, %v703, 0.0
    %v708 = vadd.f32 %v706, %v696
    %v709 = vadd.f32 %v707, %v697
    %710 = vst [vmem:[%s4] sm:$0xff] %v708
    %711 = vst [vmem:[%s4 + $0x8] sm:$0xff] %v709
    // Predicated region
    $region22: #{rnn_agent_forward.1} parent=1 // pred_check
      _
    $region23: #{rnn_agent_forward.1} parent=1 // pred_check_branch
      %713 = sbr.rel (0) target = $region25
    $region24: #{rnn_agent_forward.1} parent=1 // pred_region
      _
    $region25: #{rnn_agent_forward.1} parent=1 // pred_fallthru
      _
    // Predicated region
    $region26: #{rnn_agent_forward.1} parent=1 // pred_check
      _
    $region27: #{rnn_agent_forward.1} parent=1 // pred_check_branch
      %715 = sbr.rel (0) target = $region29
    $region28: #{rnn_agent_forward.1} parent=1 // pred_region
      _
    $region29: #{rnn_agent_forward.1} parent=1 // pred_fallthru
      _
    %716 = vsyncpa [#allocation3], 1

</llo_original>
